<compile_context>
chip_gen: v7x
topology: tpu7x:2x2x1
jax: 0.10.0
libtpu: 0.0.40
codegen_flags: <defaults>
</compile_context>

<pallas_src>
import jax
import jax.numpy as jnp
from jax.experimental import pallas as pl
from jax.experimental.pallas import tpu as pltpu


BATCH_TILE = 8  # batch-tile rows; batch is padded to a multiple of this


# ----------------------------------------------------------------------------
# Fused kernel: encoder stand-in + masked mean pooling + cosine similarity
# ----------------------------------------------------------------------------
def snn_fused_kernel(emb_ref, mask_ref, w_ref, b_ref, out_ref,
                     pooled_acc, denom_acc):
    """Grid = (B_pad // TB, S // TS).
    emb_ref   : (TB, 2, TS, H) bf16   both siamese branches, TB batch items
    mask_ref  : (TB, 2, TS, 1) f32
    w_ref     : (H, H)         bf16   VMEM-resident across the whole grid
    b_ref     : (1, H)         f32
    out_ref   : (TB, 128)      f32    cosine broadcast over a lane-dense row
    pooled_acc: (TB, 2, H) f32 scratch, denom_acc: (TB, 2, 1) f32 scratch
    """
    si = pl.program_id(1)

    @pl.when(si == 0)
    def _init():
        pooled_acc[...] = jnp.zeros_like(pooled_acc)
        denom_acc[...] = jnp.zeros_like(denom_acc)

    TB, TWO, TS, H = emb_ref.shape

    # One fused MXU matmul for both branches and the whole batch tile:
    # (TB*2*TS, H) @ (H, H), bf16 operands, f32 accumulate.
    x = emb_ref[...].reshape(TB * TWO * TS, H)                       # bf16
    y = jnp.dot(x, w_ref[...], preferred_element_type=jnp.float32)
    y = jnp.tanh(y + b_ref[...])                                     # (R, H) f32
    y = y.reshape(TB, TWO, TS, H)

    m = mask_ref[...]                                                # (TB,2,TS,1) f32
    pooled_acc[...] += jnp.sum(y * m, axis=2)                        # (TB, 2, H)
    denom_acc[...] += jnp.sum(m, axis=2)                             # (TB, 2, 1)

    @pl.when(si == pl.num_programs(1) - 1)
    def _finalize():
        # masked mean: sum / clamp(count, min=1e-9)   (reciprocal on the EUP)
        inv_d = pl.reciprocal(jnp.maximum(denom_acc[...], 1e-9), approx=True)
        pooled = pooled_acc[...] * inv_d                             # (TB, 2, H)
        p1 = pooled[:, 0, :]                                         # (TB, H)
        p2 = pooled[:, 1, :]
        dot = jnp.sum(p1 * p2, axis=-1, keepdims=True)               # (TB, 1)
        n1 = jnp.sum(p1 * p1, axis=-1, keepdims=True)
        n2 = jnp.sum(p2 * p2, axis=-1, keepdims=True)
        # torch CosineSimilarity(eps=1e-4): dot / max(||a||*||b||, eps)
        #   == dot * rsqrt(max(||a||^2 * ||b||^2, eps^2))   (rsqrt on the EUP)
        cos = dot * jax.lax.rsqrt(jnp.maximum(n1 * n2, 1e-4 * 1e-4))
        out_ref[...] = jnp.broadcast_to(cos, out_ref.shape)          # (TB, 128)


def _pick_seq_tile(seq_len):
    if seq_len <= 64:
        return seq_len
    for ts in (64, 32, 16, 8):
        if seq_len % ts == 0:
            return ts
    return seq_len


def snn_forward(emb, mask_f32, w, b):
    """emb: [B_pad, 2, S, H] bf16, mask_f32: [B_pad, 2, S, 1] f32,
    w: [H, H] bf16, b: [1, H] f32  ->  cosine similarity [B_pad] f32.
    B_pad must be a multiple of BATCH_TILE."""
    B, two, S, H = emb.shape
    assert two == 2 and B % BATCH_TILE == 0
    TS = _pick_seq_tile(S)
    n_s = S // TS
    TB = min(B, BATCH_TILE)

    out = pl.pallas_call(
        snn_fused_kernel,
        out_shape=jax.ShapeDtypeStruct((B, 128), jnp.float32),
        grid_spec=pltpu.PrefetchScalarGridSpec(
            num_scalar_prefetch=0,
            grid=(B // TB, n_s),
            in_specs=[
                pl.BlockSpec((TB, 2, TS, H), lambda bi, si: (bi, 0, si, 0)),
                pl.BlockSpec((TB, 2, TS, 1), lambda bi, si: (bi, 0, si, 0)),
                pl.BlockSpec((H, H), lambda bi, si: (0, 0)),   # pinned weights
                pl.BlockSpec((1, H), lambda bi, si: (0, 0)),   # pinned bias
            ],
            out_specs=pl.BlockSpec((TB, 128), lambda bi, si: (bi, 0)),
            scratch_shapes=[
                pltpu.VMEM((TB, 2, H), jnp.float32),   # pooled-sum accumulator
                pltpu.VMEM((TB, 2, 1), jnp.float32),   # mask-count accumulator
            ],
        ),
        compiler_params=pltpu.CompilerParams(
            dimension_semantics=("parallel", "arbitrary"),
        ),
    )(emb, mask_f32, w, b)
    # Each batch row's lane-dense (128,) slab carries its cosine; take lane 0.
    return out[:, 0]


# ----------------------------------------------------------------------------
# SNN forward (glue in plain JAX, hot path in the fused Pallas kernel above)
# ----------------------------------------------------------------------------
class SNNPallas:
    """JAX/Pallas analogue of the PyTorch SNN module."""

    def __init__(self, vocab=64, hidden=128, seed=0):
        self.H = hidden
        k = jax.random.PRNGKey(seed)
        k_emb, k_w, k_b = jax.random.split(k, 3)
        # TODO(synk): the pretrained AutoModel transformer stack has no
        #             checkpoint to reproduce; embedding + tanh(xW+b) stands in.
        self.embed = (jax.random.normal(k_emb, (vocab, hidden), jnp.float32)
                      * 0.02).astype(jnp.bfloat16)
        self.w = (jax.random.normal(k_w, (hidden, hidden), jnp.float32)
                  * 0.05).astype(jnp.bfloat16)
        self.b = jax.random.normal(k_b, (1, hidden), jnp.float32) * 0.01

    def __call__(self, input_ids_a, attention_a, input_ids_b, attention_b):
        B, S = input_ids_a.shape
        # Stack the two siamese branches: one gather, one kernel launch.
        ids = jnp.stack([input_ids_a, input_ids_b], axis=1)            # [B,2,S]
        mask = jnp.stack([attention_a, attention_b], axis=1)           # [B,2,S]
        # Pad batch to a multiple of 8 for clean (8,128) output tiling;
        # padded rows have mask==0 and are sliced off below.
        B_pad = ((B + BATCH_TILE - 1) // BATCH_TILE) * BATCH_TILE
        if B_pad != B:
            ids = jnp.pad(ids, ((0, B_pad - B), (0, 0), (0, 0)))
            mask = jnp.pad(mask, ((0, B_pad - B), (0, 0), (0, 0)))
        mask_f = mask.astype(jnp.float32)[..., None]                   # [B_pad,2,S,1]
        # TODO(synk): move this gather in-kernel (scalar-prefetched ids driving
        #             a row-gather BlockSpec) to remove the HBM intermediate.
        emb = jnp.take(self.embed, ids, axis=0)                        # [B_pad,2,S,H] bf16
        cos = snn_forward(emb, mask_f, self.w, self.b)                 # [B_pad]
        return cos[:B]


def _reference(model, input_ids_a, attention_a, input_ids_b, attention_b):
    """Pure-JAX f32 reference with identical semantics (for a sanity check)."""
    w = model.w.astype(jnp.float32)
    b = model.b

    def encode_pool(ids, att):
        x = jnp.take(model.embed, ids, axis=0).astype(jnp.float32)    # [B,S,H]
        y = jnp.tanh(x @ w + b)                                       # [B,S,H]
        m = att.astype(jnp.float32)[..., None]                        # [B,S,1]
        return jnp.sum(y * m, axis=1) / jnp.maximum(jnp.sum(m, axis=1), 1e-9)

    p1 = encode_pool(input_ids_a, attention_a)
    p2 = encode_pool(input_ids_b, attention_b)
    num = jnp.sum(p1 * p2, axis=-1)
    den = jnp.maximum(jnp.linalg.norm(p1, axis=-1) * jnp.linalg.norm(p2, axis=-1),
                      1e-4)
    return num / den


if __name__ == "__main__":
    B, S, H, V = 2, 8, 128, 64
    key = jax.random.PRNGKey(0)
    k1, k2 = jax.random.split(key)

    input_ids_a = jax.random.randint(k1, (B, S), 0, V, dtype=jnp.int32)
    input_ids_b = jax.random.randint(k2, (B, S), 0, V, dtype=jnp.int32)
    # variable-length attention masks (1 = real token, 0 = padding)
    attention_a = (jnp.arange(S)[None, :] < jnp.array([[6], [8]])).astype(jnp.int32)
    attention_b = (jnp.arange(S)[None, :] < jnp.array([[8], [5]])).astype(jnp.int32)

    model = SNNPallas(vocab=V, hidden=H, seed=0)
    pred = model(input_ids_a, attention_a, input_ids_b, attention_b)
    jax.block_until_ready(pred)

    assert pred.shape == (B,)
    assert bool(jnp.all(jnp.isfinite(pred)))

    ref = _reference(model, input_ids_a, attention_a, input_ids_b, attention_b)
    assert bool(jnp.allclose(pred, ref, atol=2e-2)), (pred, ref)

    print("KERNEL_OK")
</pallas_src>

<mosaic_0001>
module attributes {stable_mosaic.version = 11 : i64} {
  func.func @snn_fused_kernel(%arg0: i32, %arg1: i32, %arg2: memref<8x2x8x128xbf16, #tpu.memory_space<vmem>>, %arg3: memref<8x2x8x1xf32, #tpu.memory_space<vmem>>, %arg4: memref<128x128xbf16, #tpu.memory_space<vmem>>, %arg5: memref<1x128xf32, #tpu.memory_space<vmem>>, %arg6: memref<8x128xf32, #tpu.memory_space<vmem>>, %arg7: memref<8x2x128xf32, #tpu.memory_space<vmem>>, %arg8: memref<8x2x1xf32, #tpu.memory_space<vmem>>) attributes {dimension_semantics = [#tpu.dimension_semantics<parallel>, #tpu.dimension_semantics<arbitrary>], iteration_bounds = array<i64: 1, 1>, scalar_prefetch = 0 : i64, scratch_operands = 2 : i64, tpu.core_type = #tpu.core_type<tc>, window_params = [{transform_indices = @transform_0, window_bounds = array<i64: 8, 2, 8, 128>}, {transform_indices = @transform_1, window_bounds = array<i64: 8, 2, 8, 1>}, {pipeline_mode = #tpu.pipeline_mode<synchronous>, transform_indices = @transform_2, window_bounds = array<i64: 128, 128>}, {pipeline_mode = #tpu.pipeline_mode<synchronous>, transform_indices = @transform_3, window_bounds = array<i64: 1, 128>}, {transform_indices = @transform_4, window_bounds = array<i64: 8, 128>}]} {
    %c0_i32 = arith.constant 0 : i32
    %0 = arith.cmpi eq, %arg1, %c0_i32 : i32
    %1 = arith.extui %0 : i1 to i32
    %c0_i32_0 = arith.constant 0 : i32
    %2 = arith.cmpi ne, %1, %c0_i32_0 : i32
    scf.if %2 {
      %cst_28 = arith.constant 0.000000e+00 : f32
      %26 = vector.broadcast %cst_28 : f32 to vector<8x2x128xf32>
      %c0_29 = arith.constant 0 : index
      %c0_30 = arith.constant 0 : index
      %c0_31 = arith.constant 0 : index
      %27 = vector.load %arg7[%c0_29, %c0_30, %c0_31] : memref<8x2x128xf32, #tpu.memory_space<vmem>>, vector<8x2x128xf32>
      tpu.vector_store %arg7[%c0_29, %c0_30, %c0_31], %26 {strides = array<i32>} : memref<8x2x128xf32, #tpu.memory_space<vmem>>, vector<8x2x128xf32>,
      %cst_32 = arith.constant 0.000000e+00 : f32
      %28 = vector.broadcast %cst_32 : f32 to vector<8x2x1xf32>
      %c0_33 = arith.constant 0 : index
      %c0_34 = arith.constant 0 : index
      %c0_35 = arith.constant 0 : index
      %29 = vector.load %arg8[%c0_33, %c0_34, %c0_35] : memref<8x2x1xf32, #tpu.memory_space<vmem>>, vector<8x2x1xf32>
      tpu.vector_store %arg8[%c0_33, %c0_34, %c0_35], %28 {strides = array<i32>} : memref<8x2x1xf32, #tpu.memory_space<vmem>>, vector<8x2x1xf32>,
    } else {
    }
    %c0 = arith.constant 0 : index
    %c0_1 = arith.constant 0 : index
    %c0_2 = arith.constant 0 : index
    %c0_3 = arith.constant 0 : index
    %3 = vector.load %arg2[%c0, %c0_1, %c0_2, %c0_3] : memref<8x2x8x128xbf16, #tpu.memory_space<vmem>>, vector<8x2x8x128xbf16>
    %4 = vector.shape_cast %3 : vector<8x2x8x128xbf16> to vector<128x128xbf16>
    %c0_4 = arith.constant 0 : index
    %c0_5 = arith.constant 0 : index
    %5 = vector.load %arg4[%c0_4, %c0_5] : memref<128x128xbf16, #tpu.memory_space<vmem>>, vector<128x128xbf16>
    %cst = arith.constant dense<0.000000e+00> : vector<128x128xf32>
    %6 = tpu.matmul %4, %5, %cst {dimension_numbers = #tpu.dot_dimension_numbers<[1], [0], [0], [1], [0, 0, 1, 1], [], []>} : vector<128x128xbf16>, vector<128x128xbf16>, vector<128x128xf32> -> vector<128x128xf32>
    %c0_6 = arith.constant 0 : index
    %c0_7 = arith.constant 0 : index
    %7 = vector.load %arg5[%c0_6, %c0_7] : memref<1x128xf32, #tpu.memory_space<vmem>>, vector<1x128xf32>
    %8 = vector.broadcast %7 : vector<1x128xf32> to vector<128x128xf32>
    %9 = arith.addf %6, %8 : vector<128x128xf32>
    %10 = math.tanh %9 : vector<128x128xf32>
    %11 = vector.shape_cast %10 : vector<128x128xf32> to vector<8x2x8x128xf32>
    %c0_8 = arith.constant 0 : index
    %c0_9 = arith.constant 0 : index
    %c0_10 = arith.constant 0 : index
    %c0_11 = arith.constant 0 : index
    %12 = vector.load %arg3[%c0_8, %c0_9, %c0_10, %c0_11] : memref<8x2x8x1xf32, #tpu.memory_space<vmem>>, vector<8x2x8x1xf32>
    %c0_12 = arith.constant 0 : index
    %c0_13 = arith.constant 0 : index
    %c0_14 = arith.constant 0 : index
    %13 = vector.load %arg7[%c0_12, %c0_13, %c0_14] : memref<8x2x128xf32, #tpu.memory_space<vmem>>, vector<8x2x128xf32>
    %14 = vector.broadcast %12 : vector<8x2x8x1xf32> to vector<8x2x8x128xf32>
    %15 = arith.mulf %11, %14 : vector<8x2x8x128xf32>
    %cst_15 = arith.constant dense<0.000000e+00> : vector<8x2x128xf32>
    %16 = vector.multi_reduction <add>, %15, %cst_15 [2] : vector<8x2x8x128xf32> to vector<8x2x128xf32>
    %17 = arith.addf %13, %16 : vector<8x2x128xf32>
    %c0_16 = arith.constant 0 : index
    %c0_17 = arith.constant 0 : index
    %c0_18 = arith.constant 0 : index
    %18 = vector.load %arg7[%c0_16, %c0_17, %c0_18] : memref<8x2x128xf32, #tpu.memory_space<vmem>>, vector<8x2x128xf32>
    tpu.vector_store %arg7[%c0_16, %c0_17, %c0_18], %17 {strides = array<i32>} : memref<8x2x128xf32, #tpu.memory_space<vmem>>, vector<8x2x128xf32>,
    %c0_19 = arith.constant 0 : index
    %c0_20 = arith.constant 0 : index
    %c0_21 = arith.constant 0 : index
    %19 = vector.load %arg8[%c0_19, %c0_20, %c0_21] : memref<8x2x1xf32, #tpu.memory_space<vmem>>, vector<8x2x1xf32>
    %cst_22 = arith.constant dense<0.000000e+00> : vector<8x2x1xf32>
    %20 = vector.multi_reduction <add>, %12, %cst_22 [2] : vector<8x2x8x1xf32> to vector<8x2x1xf32>
    %21 = arith.addf %19, %20 : vector<8x2x1xf32>
    %c0_23 = arith.constant 0 : index
    %c0_24 = arith.constant 0 : index
    %c0_25 = arith.constant 0 : index
    %22 = vector.load %arg8[%c0_23, %c0_24, %c0_25] : memref<8x2x1xf32, #tpu.memory_space<vmem>>, vector<8x2x1xf32>
    tpu.vector_store %arg8[%c0_23, %c0_24, %c0_25], %21 {strides = array<i32>} : memref<8x2x1xf32, #tpu.memory_space<vmem>>, vector<8x2x1xf32>,
    %c0_i32_26 = arith.constant 0 : i32
    %23 = arith.cmpi eq, %arg1, %c0_i32_26 : i32
    %24 = arith.extui %23 : i1 to i32
    %c0_i32_27 = arith.constant 0 : i32
    %25 = arith.cmpi ne, %24, %c0_i32_27 : i32
    scf.if %25 {
      %c0_28 = arith.constant 0 : index
      %c0_29 = arith.constant 0 : index
      %c0_30 = arith.constant 0 : index
      %26 = vector.load %arg8[%c0_28, %c0_29, %c0_30] : memref<8x2x1xf32, #tpu.memory_space<vmem>>, vector<8x2x1xf32>
      %cst_31 = arith.constant 9.99999971E-10 : f32
      %27 = vector.broadcast %cst_31 : f32 to vector<8x2x1xf32>
      %28 = arith.maximumf %26, %27 : vector<8x2x1xf32>
      %29 = tpu.reciprocal %28 {approx = true} : vector<8x2x1xf32> -> vector<8x2x1xf32>
      %c0_32 = arith.constant 0 : index
      %c0_33 = arith.constant 0 : index
      %c0_34 = arith.constant 0 : index
      %30 = vector.load %arg7[%c0_32, %c0_33, %c0_34] : memref<8x2x128xf32, #tpu.memory_space<vmem>>, vector<8x2x128xf32>
      %31 = vector.broadcast %29 : vector<8x2x1xf32> to vector<8x2x128xf32>
      %32 = arith.mulf %30, %31 : vector<8x2x128xf32>
      %33 = vector.extract_strided_slice %32 {offsets = [0, 0, 0], sizes = [8, 1, 128], strides = [1, 1, 1]} : vector<8x2x128xf32> to vector<8x1x128xf32>
      %34 = vector.shape_cast %33 : vector<8x1x128xf32> to vector<8x128xf32>
      %35 = vector.extract_strided_slice %32 {offsets = [0, 1, 0], sizes = [8, 1, 128], strides = [1, 1, 1]} : vector<8x2x128xf32> to vector<8x1x128xf32>
      %36 = vector.shape_cast %35 : vector<8x1x128xf32> to vector<8x128xf32>
      %37 = arith.mulf %34, %36 : vector<8x128xf32>
      %cst_35 = arith.constant dense<0.000000e+00> : vector<8xf32>
      %38 = vector.multi_reduction <add>, %37, %cst_35 [1] : vector<8x128xf32> to vector<8xf32>
      %39 = vector.shape_cast %38 : vector<8xf32> to vector<8x1xf32>
      %40 = arith.mulf %34, %34 : vector<8x128xf32>
      %cst_36 = arith.constant dense<0.000000e+00> : vector<8xf32>
      %41 = vector.multi_reduction <add>, %40, %cst_36 [1] : vector<8x128xf32> to vector<8xf32>
      %42 = vector.shape_cast %41 : vector<8xf32> to vector<8x1xf32>
      %43 = arith.mulf %36, %36 : vector<8x128xf32>
      %cst_37 = arith.constant dense<0.000000e+00> : vector<8xf32>
      %44 = vector.multi_reduction <add>, %43, %cst_37 [1] : vector<8x128xf32> to vector<8xf32>
      %45 = vector.shape_cast %44 : vector<8xf32> to vector<8x1xf32>
      %46 = arith.mulf %42, %45 : vector<8x1xf32>
      %cst_38 = arith.constant 9.99999993E-9 : f32
      %47 = vector.broadcast %cst_38 : f32 to vector<8x1xf32>
      %48 = arith.maximumf %46, %47 : vector<8x1xf32>
      %49 = math.rsqrt %48 : vector<8x1xf32>
      %50 = arith.mulf %39, %49 : vector<8x1xf32>
      %51 = vector.shape_cast %50 : vector<8x1xf32> to vector<8x1xf32>
      %52 = vector.broadcast %51 : vector<8x1xf32> to vector<8x128xf32>
      %c0_39 = arith.constant 0 : index
      %c0_40 = arith.constant 0 : index
      %53 = vector.load %arg6[%c0_39, %c0_40] : memref<8x128xf32, #tpu.memory_space<vmem>>, vector<8x128xf32>
      tpu.vector_store %arg6[%c0_39, %c0_40], %52 {strides = array<i32>} : memref<8x128xf32, #tpu.memory_space<vmem>>, vector<8x128xf32>,
    } else {
    }
    return
  }
  func.func @transform_0(%arg0: i32, %arg1: i32) -> (i32, i32, i32, i32) {
    %c0_i32 = arith.constant 0 : i32
    %c0_i32_0 = arith.constant 0 : i32
    %c0_i32_1 = arith.constant 0 : i32
    return %arg0, %c0_i32, %arg1, %c0_i32_0 : i32, i32, i32, i32
  }
  func.func @transform_1(%arg0: i32, %arg1: i32) -> (i32, i32, i32, i32) {
    %c0_i32 = arith.constant 0 : i32
    %c0_i32_0 = arith.constant 0 : i32
    %c0_i32_1 = arith.constant 0 : i32
    return %arg0, %c0_i32, %arg1, %c0_i32_0 : i32, i32, i32, i32
  }
  func.func @transform_2(%arg0: i32, %arg1: i32) -> (i32, i32) {
    %c0_i32 = arith.constant 0 : i32
    %c0_i32_0 = arith.constant 0 : i32
    %c0_i32_1 = arith.constant 0 : i32
    return %c0_i32, %c0_i32_0 : i32, i32
  }
  func.func @transform_3(%arg0: i32, %arg1: i32) -> (i32, i32) {
    %c0_i32 = arith.constant 0 : i32
    %c0_i32_0 = arith.constant 0 : i32
    %c0_i32_1 = arith.constant 0 : i32
    return %c0_i32, %c0_i32_0 : i32, i32
  }
  func.func @transform_4(%arg0: i32, %arg1: i32) -> (i32, i32) {
    %c0_i32 = arith.constant 0 : i32
    %c0_i32_0 = arith.constant 0 : i32
    return %arg0, %c0_i32 : i32, i32
  }
}

</mosaic_0001>

<llo_original>
// kernel: tpu_custom_call.1
$region0: #{tpu_custom_call.1}
  #allocation0 [shape = 'u32[]', space=smem, size = 0x4, offset = 0x4, fixed_abs, tag = 'smem constant byte address 0x4 - core index']
  #allocation1 [shape = 'u32[144,128]{1,0:T(1,128)}', space=vmem, size = 0x12000, scoped, tag = 'internal scratch']
  #allocation2 [shape = 'f32[8,2,128]{2,1,0:T(2,128)}', space=vmem, size = 0x2000, scoped, tag = 'scratch operand']
  #allocation3 [shape = 'f32[8,2,1]{2,1,0:T(2,128)}', space=vmem, size = 0x2000, scoped, tag = 'scratch operand']
  %s0 = inlined_call_operand.vmem [shape: bf16[8,2,8,128], index: 0, kind: input, shape index: {}]
  %s1 = inlined_call_operand.vmem [shape: f32[8,2,8,1], index: 1, kind: input, shape index: {}]
  %s2 = inlined_call_operand.vmem [shape: bf16[128,128], index: 2, kind: input, shape index: {}]
  %s3 = inlined_call_operand.vmem [shape: f32[1,128], index: 3, kind: input, shape index: {}]
  %s4 = inlined_call_operand.hbm [shape: f32[8,128], index: 4, kind: output, shape index: {}]
  %s5 = sld [smem:[#allocation0]]
  $region34: #{tpu_custom_call.1} parent=0
    _
  %s7 = ssub.s32 1, %s5
  %s8 = scalar_select 0, %s7, %s5
  $region1: #{tpu_custom_call.1} parent=0
    #allocation4 [shape = 'u8[4096]{0}', space=vmem, size = 0x1000, scoped, tag = 'output window, operand 0, single buffered']
    #allocation5 [shape = 's32[1]{0}', space=sflag, size = 0x4, scoped, tag = 'scoped memory for tpu_custom_call.1']
    %9 = vsyncpa [#allocation5], 0
    // Predicated region
    $region2: #{tpu_custom_call.1} parent=1 // pred_check
      _
    $region3: #{tpu_custom_call.1} parent=1 // pred_check_branch
      %11 = sbr.rel (0) target = $region5
    $region4: #{tpu_custom_call.1} parent=1 // pred_region
      _
    $region5: #{tpu_custom_call.1} parent=1 // pred_fallthru
      _
    // Predicated region
    $region6: #{tpu_custom_call.1} parent=1 // pred_check
      _
    $region7: #{tpu_custom_call.1} parent=1 // pred_check_branch
      %13 = sbr.rel (0) target = $region9
    $region8: #{tpu_custom_call.1} parent=1 // pred_region
      _
    $region9: #{tpu_custom_call.1} parent=1 // pred_fallthru
      _
    // Predicated region
    $region10: #{tpu_custom_call.1} parent=1 // pred_check
      _
    $region11: #{tpu_custom_call.1} parent=1 // pred_check_branch
      %15 = sbr.rel (0) target = $region13
    $region12: #{tpu_custom_call.1} parent=1 // pred_region
      _
    $region13: #{tpu_custom_call.1} parent=1 // pred_fallthru
      _
    // Predicated region
    $region14: #{tpu_custom_call.1} parent=1 // pred_check
      _
    $region15: #{tpu_custom_call.1} parent=1 // pred_check_branch
      %17 = sbr.rel (0) target = $region17
    $region16: #{tpu_custom_call.1} parent=1 // pred_region
      _
    $region17: #{tpu_custom_call.1} parent=1 // pred_fallthru
      _
    %p19 = scmp.eq.s32.totalorder 0, 0
    // Predicated region
    $region18: #{tpu_custom_call.1} parent=1 // pred_check
      %p20 = pneg %p19
    $region19: #{tpu_custom_call.1} parent=1 // pred_check_branch
      %22 = sbr.rel (%p20) target = $region21
    $region20: #{tpu_custom_call.1} parent=1 // pred_region
      %23 = vst [vmem:[#allocation2] sm:$0x3] 0.0
      %24 = vst [vmem:[#allocation2 + $0x2] sm:$0x3] 0.0
      %25 = vst [vmem:[#allocation2 + $0x4] sm:$0x3] 0.0
      %26 = vst [vmem:[#allocation2 + $0x6] sm:$0x3] 0.0
      %27 = vst [vmem:[#allocation2 + $0x8] sm:$0x3] 0.0
      %28 = vst [vmem:[#allocation2 + $0xa] sm:$0x3] 0.0
      %29 = vst [vmem:[#allocation2 + $0xc] sm:$0x3] 0.0
      %30 = vst [vmem:[#allocation2 + $0xe] sm:$0x3] 0.0
      %vm31 = vcmask 1024
      %32 = vst.msk [vmem:[#allocation3] sm:$0x3] %vm31, 0.0
      %33 = vst.msk [vmem:[#allocation3 + $0x2] sm:$0x3] %vm31, 0.0
      %34 = vst.msk [vmem:[#allocation3 + $0x4] sm:$0x3] %vm31, 0.0
      %35 = vst.msk [vmem:[#allocation3 + $0x6] sm:$0x3] %vm31, 0.0
      %36 = vst.msk [vmem:[#allocation3 + $0x8] sm:$0x3] %vm31, 0.0
      %37 = vst.msk [vmem:[#allocation3 + $0xa] sm:$0x3] %vm31, 0.0
      %38 = vst.msk [vmem:[#allocation3 + $0xc] sm:$0x3] %vm31, 0.0
      %39 = vst.msk [vmem:[#allocation3 + $0xe] sm:$0x3] %vm31, 0.0
    $region21: #{tpu_custom_call.1} parent=1 // pred_fallthru
      _
    %v40 = vld [vmem:[%s0] sm:$0xf]
    %v41 = vld [vmem:[%s0 + $0x4] sm:$0xf]
    %v42 = vld [vmem:[%s0 + $0x8] sm:$0xf]
    %v43 = vld [vmem:[%s0 + $0xc] sm:$0xf]
    %v44 = vld [vmem:[%s0 + $0x10] sm:$0xf]
    %v45 = vld [vmem:[%s0 + $0x14] sm:$0xf]
    %v46 = vld [vmem:[%s0 + $0x18] sm:$0xf]
    %v47 = vld [vmem:[%s0 + $0x1c] sm:$0xf]
    %v48 = vld [vmem:[%s0 + $0x20] sm:$0xf]
    %v49 = vld [vmem:[%s0 + $0x24] sm:$0xf]
    %v50 = vld [vmem:[%s0 + $0x28] sm:$0xf]
    %v51 = vld [vmem:[%s0 + $0x2c] sm:$0xf]
    %v52 = vld [vmem:[%s0 + $0x30] sm:$0xf]
    %v53 = vld [vmem:[%s0 + $0x34] sm:$0xf]
    %v54 = vld [vmem:[%s0 + $0x38] sm:$0xf]
    %v55 = vld [vmem:[%s0 + $0x3c] sm:$0xf]
    %v56 = vld [vmem:[%s2] sm:$0xf]
    %v57 = vld [vmem:[%s2 + $0x4] sm:$0xf]
    %v58 = vld [vmem:[%s2 + $0x8] sm:$0xf]
    %v59 = vld [vmem:[%s2 + $0xc] sm:$0xf]
    %v60 = vld [vmem:[%s2 + $0x10] sm:$0xf]
    %v61 = vld [vmem:[%s2 + $0x14] sm:$0xf]
    %v62 = vld [vmem:[%s2 + $0x18] sm:$0xf]
    %v63 = vld [vmem:[%s2 + $0x1c] sm:$0xf]
    %v64 = vld [vmem:[%s2 + $0x20] sm:$0xf]
    %v65 = vld [vmem:[%s2 + $0x24] sm:$0xf]
    %v66 = vld [vmem:[%s2 + $0x28] sm:$0xf]
    %v67 = vld [vmem:[%s2 + $0x2c] sm:$0xf]
    %v68 = vld [vmem:[%s2 + $0x30] sm:$0xf]
    %v69 = vld [vmem:[%s2 + $0x34] sm:$0xf]
    %v70 = vld [vmem:[%s2 + $0x38] sm:$0xf]
    %v71 = vld [vmem:[%s2 + $0x3c] sm:$0xf]
    %v72 = vld [vmem:[%s3] sm:$0x1]
    %v74 = vlaneseq
    %v75 = vshrl.u32 %v74, 7
    %v76 = vsub.s32 0, %v75
    %v77 = vrot.slane %v72, %v76
    %v95 = vunpack.c.l.b16 %v40
    %v96 = vunpack.c.l.b16 %v41
    %v97 = vunpack.c.l.b16 %v42
    %v98 = vunpack.c.l.b16 %v43
    %v99 = vunpack.c.l.b16 %v44
    %v100 = vunpack.c.l.b16 %v45
    %v101 = vunpack.c.l.b16 %v46
    %v102 = vunpack.c.l.b16 %v47
    %v103 = vunpack.c.l.b16 %v48
    %v104 = vunpack.c.l.b16 %v49
    %v105 = vunpack.c.l.b16 %v50
    %v106 = vunpack.c.l.b16 %v51
    %v107 = vunpack.c.l.b16 %v52
    %v108 = vunpack.c.l.b16 %v53
    %v109 = vunpack.c.l.b16 %v54
    %v110 = vunpack.c.l.b16 %v55
    %v111 = vpack.c.b16 %v96, %v95
    %v112 = vpack.c.b16 %v98, %v97
    %v113 = vpack.c.b16 %v100, %v99
    %v114 = vpack.c.b16 %v102, %v101
    %v115 = vpack.c.b16 %v104, %v103
    %v116 = vpack.c.b16 %v106, %v105
    %v117 = vpack.c.b16 %v108, %v107
    %v118 = vpack.c.b16 %v110, %v109
    %v143 = vunpack.c.l.b16 %v56
    %v144 = vunpack.c.l.b16 %v57
    %v145 = vunpack.c.l.b16 %v58
    %v146 = vunpack.c.l.b16 %v59
    %v147 = vunpack.c.l.b16 %v60
    %v148 = vunpack.c.l.b16 %v61
    %v149 = vunpack.c.l.b16 %v62
    %v150 = vunpack.c.l.b16 %v63
    %v151 = vunpack.c.l.b16 %v64
    %v152 = vunpack.c.l.b16 %v65
    %v153 = vunpack.c.l.b16 %v66
    %v154 = vunpack.c.l.b16 %v67
    %v155 = vunpack.c.l.b16 %v68
    %v156 = vunpack.c.l.b16 %v69
    %v157 = vunpack.c.l.b16 %v70
    %v158 = vunpack.c.l.b16 %v71
    %v159 = vpack.c.b16 %v144, %v143
    %v160 = vpack.c.b16 %v146, %v145
    %v161 = vpack.c.b16 %v148, %v147
    %v162 = vpack.c.b16 %v150, %v149
    %v163 = vpack.c.b16 %v152, %v151
    %v164 = vpack.c.b16 %v154, %v153
    %v165 = vpack.c.b16 %v156, %v155
    %v166 = vpack.c.b16 %v158, %v157
    %175 = vmatprep.subr.bf16.mxu0 0
    %176 = vmatpush1.bf16.msra.mxu0 %v159
    %177 = vmatprep.subr.bf16.mxu0 0
    %178 = vmatpush1.bf16.msra.mxu0 %v160
    %179 = vmatprep.subr.bf16.mxu0 0
    %180 = vmatpush1.bf16.msra.mxu0 %v161
    %181 = vmatprep.subr.bf16.mxu0 0
    %182 = vmatpush1.bf16.msra.mxu0 %v162
    %183 = vmatprep.subr.bf16.mxu0 0
    %184 = vmatpush1.bf16.msra.mxu0 %v163
    %185 = vmatprep.subr.bf16.mxu0 0
    %186 = vmatpush1.bf16.msra.mxu0 %v164
    %187 = vmatprep.subr.bf16.mxu0 0
    %188 = vmatpush1.bf16.msra.mxu0 %v165
    %189 = vmatprep.subr.bf16.mxu0 0
    %190 = vmatpush1.bf16.msra.mxu0 %v166
    %191 = vmatprep.subr.bf16.mxu0 0
    %192 = vmatpush1.bf16.msra.mxu0 0
    %193 = vmatprep.subr.bf16.mxu0 0
    %194 = vmatpush1.bf16.msra.mxu0 0
    %195 = vmatprep.subr.bf16.mxu0 0
    %196 = vmatpush1.bf16.msra.mxu0 0
    %197 = vmatprep.subr.bf16.mxu0 0
    %198 = vmatpush1.bf16.msra.mxu0 0
    %199 = vmatprep.subr.bf16.mxu0 0
    %200 = vmatpush1.bf16.msra.mxu0 0
    %201 = vmatprep.subr.bf16.mxu0 0
    %202 = vmatpush1.bf16.msra.mxu0 0
    %203 = vmatprep.subr.bf16.mxu0 0
    %204 = vmatpush1.bf16.msra.mxu0 0
    %205 = vmatprep.subr.bf16.mxu0 0
    %206 = vmatpush1.bf16.msra.mxu0 0
    %207 = vmatprep.mubr.bf16.mxu0 0
    %208 = vmatmul.mubr.bf16.gmra.mrb[0].mxu0 %v111
    %v209 = vpop.f32.mrb[0].mxu0
    %v210 = vadd.f32 %v77, %v209
    %v211 = vpop.f32.mrb[0].mxu0
    %v212 = vpop.f32.mrb[0].mxu0
    %v213 = vadd.f32 %v77, %v212
    %v214 = vpop.f32.mrb[0].mxu0
    %215 = vmatprep.mubr.bf16.mxu0 0
    %216 = vmatmul.mubr.bf16.gmra.mrb[0].mxu0 %v112
    %v217 = vpop.f32.mrb[0].mxu0
    %v218 = vadd.f32 %v77, %v217
    %v219 = vpop.f32.mrb[0].mxu0
    %v220 = vpop.f32.mrb[0].mxu0
    %v221 = vadd.f32 %v77, %v220
    %v222 = vpop.f32.mrb[0].mxu0
    %223 = vmatprep.mubr.bf16.mxu0 0
    %224 = vmatmul.mubr.bf16.gmra.mrb[0].mxu0 %v113
    %v225 = vpop.f32.mrb[0].mxu0
    %v226 = vadd.f32 %v77, %v225
    %v227 = vpop.f32.mrb[0].mxu0
    %v228 = vpop.f32.mrb[0].mxu0
    %v229 = vadd.f32 %v77, %v228
    %v230 = vpop.f32.mrb[0].mxu0
    %231 = vmatprep.mubr.bf16.mxu0 0
    %232 = vmatmul.mubr.bf16.gmra.mrb[0].mxu0 %v114
    %v233 = vpop.f32.mrb[0].mxu0
    %v234 = vadd.f32 %v77, %v233
    %v235 = vpop.f32.mrb[0].mxu0
    %v236 = vpop.f32.mrb[0].mxu0
    %v237 = vadd.f32 %v77, %v236
    %v238 = vpop.f32.mrb[0].mxu0
    %239 = vmatprep.mubr.bf16.mxu0 0
    %240 = vmatmul.mubr.bf16.gmra.mrb[0].mxu0 %v115
    %v241 = vpop.f32.mrb[0].mxu0
    %v242 = vadd.f32 %v77, %v241
    %v243 = vpop.f32.mrb[0].mxu0
    %v244 = vpop.f32.mrb[0].mxu0
    %v245 = vadd.f32 %v77, %v244
    %v246 = vpop.f32.mrb[0].mxu0
    %247 = vmatprep.mubr.bf16.mxu0 0
    %248 = vmatmul.mubr.bf16.gmra.mrb[0].mxu0 %v116
    %v249 = vpop.f32.mrb[0].mxu0
    %v250 = vadd.f32 %v77, %v249
    %v251 = vpop.f32.mrb[0].mxu0
    %v252 = vpop.f32.mrb[0].mxu0
    %v253 = vadd.f32 %v77, %v252
    %v254 = vpop.f32.mrb[0].mxu0
    %255 = vmatprep.mubr.bf16.mxu0 0
    %256 = vmatmul.mubr.bf16.gmra.mrb[0].mxu0 %v117
    %v257 = vpop.f32.mrb[0].mxu0
    %v258 = vadd.f32 %v77, %v257
    %v259 = vpop.f32.mrb[0].mxu0
    %v260 = vpop.f32.mrb[0].mxu0
    %v261 = vadd.f32 %v77, %v260
    %v262 = vpop.f32.mrb[0].mxu0
    %263 = vmatprep.mubr.bf16.mxu0 0
    %264 = vmatmul.mubr.bf16.gmra.mrb[0].mxu0 %v118
    %v265 = vpop.f32.mrb[0].mxu0
    %v266 = vadd.f32 %v77, %v265
    %v267 = vpop.f32.mrb[0].mxu0
    %v268 = vpop.f32.mrb[0].mxu0
    %v269 = vadd.f32 %v77, %v268
    %v270 = vpop.f32.mrb[0].mxu0
    %271 = vdwg.mxu0
    %v272 = vtanh.pop %v210
    %v273 = vtanh.pop %v213
    %v274 = vtanh.pop %v218
    %v275 = vtanh.pop %v221
    %v276 = vtanh.pop %v226
    %v277 = vtanh.pop %v229
    %v278 = vtanh.pop %v234
    %v279 = vtanh.pop %v237
    %v280 = vtanh.pop %v242
    %v281 = vtanh.pop %v245
    %v282 = vtanh.pop %v250
    %v283 = vtanh.pop %v253
    %v284 = vtanh.pop %v258
    %v285 = vtanh.pop %v261
    %v286 = vtanh.pop %v266
    %v287 = vtanh.pop %v269
    %v288 = vld [vmem:[%s1] sm:$0xff]
    %v289 = vld [vmem:[%s1 + $0x8] sm:$0xff]
    %v290 = vld [vmem:[%s1 + $0x10] sm:$0xff]
    %v291 = vld [vmem:[%s1 + $0x18] sm:$0xff]
    %v292 = vld [vmem:[%s1 + $0x20] sm:$0xff]
    %v293 = vld [vmem:[%s1 + $0x28] sm:$0xff]
    %v294 = vld [vmem:[%s1 + $0x30] sm:$0xff]
    %v295 = vld [vmem:[%s1 + $0x38] sm:$0xff]
    %v296 = vld [vmem:[%s1 + $0x40] sm:$0xff]
    %v297 = vld [vmem:[%s1 + $0x48] sm:$0xff]
    %v298 = vld [vmem:[%s1 + $0x50] sm:$0xff]
    %v299 = vld [vmem:[%s1 + $0x58] sm:$0xff]
    %v300 = vld [vmem:[%s1 + $0x60] sm:$0xff]
    %v301 = vld [vmem:[%s1 + $0x68] sm:$0xff]
    %v302 = vld [vmem:[%s1 + $0x70] sm:$0xff]
    %v303 = vld [vmem:[%s1 + $0x78] sm:$0xff]
    %v304 = vld [vmem:[#allocation2] sm:$0x3]
    %v305 = vld [vmem:[#allocation2 + $0x2] sm:$0x3]
    %v306 = vld [vmem:[#allocation2 + $0x4] sm:$0x3]
    %v307 = vld [vmem:[#allocation2 + $0x6] sm:$0x3]
    %v308 = vld [vmem:[#allocation2 + $0x8] sm:$0x3]
    %v309 = vld [vmem:[#allocation2 + $0xa] sm:$0x3]
    %v310 = vld [vmem:[#allocation2 + $0xc] sm:$0x3]
    %v311 = vld [vmem:[#allocation2 + $0xe] sm:$0x3]
    %313 = vset.pattern.permute.xlu0 0
    %314 = vperm.xlu0 %313, %v288
    %v315 = vpop.permute.xlu0 %314
    %318 = vset.pattern.permute.xlu0 0
    %319 = vperm.xlu0 %318, %v289
    %v320 = vpop.permute.xlu0 %319
    %323 = vset.pattern.permute.xlu0 0
    %324 = vperm.xlu0 %323, %v290
    %v325 = vpop.permute.xlu0 %324
    %328 = vset.pattern.permute.xlu0 0
    %329 = vperm.xlu0 %328, %v291
    %v330 = vpop.permute.xlu0 %329
    %333 = vset.pattern.permute.xlu0 0
    %334 = vperm.xlu0 %333, %v292
    %v335 = vpop.permute.xlu0 %334
    %338 = vset.pattern.permute.xlu0 0
    %339 = vperm.xlu0 %338, %v293
    %v340 = vpop.permute.xlu0 %339
    %343 = vset.pattern.permute.xlu0 0
    %344 = vperm.xlu0 %343, %v294
    %v345 = vpop.permute.xlu0 %344
    %348 = vset.pattern.permute.xlu0 0
    %349 = vperm.xlu0 %348, %v295
    %v350 = vpop.permute.xlu0 %349
    %353 = vset.pattern.permute.xlu0 0
    %354 = vperm.xlu0 %353, %v296
    %v355 = vpop.permute.xlu0 %354
    %358 = vset.pattern.permute.xlu0 0
    %359 = vperm.xlu0 %358, %v297
    %v360 = vpop.permute.xlu0 %359
    %363 = vset.pattern.permute.xlu0 0
    %364 = vperm.xlu0 %363, %v298
    %v365 = vpop.permute.xlu0 %364
    %368 = vset.pattern.permute.xlu0 0
    %369 = vperm.xlu0 %368, %v299
    %v370 = vpop.permute.xlu0 %369
    %373 = vset.pattern.permute.xlu0 0
    %374 = vperm.xlu0 %373, %v300
    %v375 = vpop.permute.xlu0 %374
    %378 = vset.pattern.permute.xlu0 0
    %379 = vperm.xlu0 %378, %v301
    %v380 = vpop.permute.xlu0 %379
    %383 = vset.pattern.permute.xlu0 0
    %384 = vperm.xlu0 %383, %v302
    %v385 = vpop.permute.xlu0 %384
    %388 = vset.pattern.permute.xlu0 0
    %389 = vperm.xlu0 %388, %v303
    %v390 = vpop.permute.xlu0 %389
    %v392 = vmul.f32 %v272, %v315
    %v393 = vmul.f32 %v273, %v320
    %v394 = vmul.f32 %v274, %v325
    %v395 = vmul.f32 %v275, %v330
    %v396 = vmul.f32 %v276, %v335
    %v397 = vmul.f32 %v277, %v340
    %v398 = vmul.f32 %v278, %v345
    %v399 = vmul.f32 %v279, %v350
    %v400 = vmul.f32 %v280, %v355
    %v401 = vmul.f32 %v281, %v360
    %v402 = vmul.f32 %v282, %v365
    %v403 = vmul.f32 %v283, %v370
    %v404 = vmul.f32 %v284, %v375
    %v405 = vmul.f32 %v285, %v380
    %v406 = vmul.f32 %v286, %v385
    %v407 = vmul.f32 %v287, %v390
    %v408 = vrot.slane %v392, 4
    %v409 = vadd.f32 %v392, %v408
    %v410 = vrot.slane %v409, 2
    %v411 = vadd.f32 %v409, %v410
    %v412 = vrot.slane %v411, 1
    %v413 = vadd.f32 %v411, %v412
    %v414 = vrot.slane %v393, 4
    %v415 = vadd.f32 %v393, %v414
    %v416 = vrot.slane %v415, 2
    %v417 = vadd.f32 %v415, %v416
    %v418 = vrot.slane %v417, 1
    %v419 = vadd.f32 %v417, %v418
    %v420 = vrot.slane %v394, 4
    %v421 = vadd.f32 %v394, %v420
    %v422 = vrot.slane %v421, 2
    %v423 = vadd.f32 %v421, %v422
    %v424 = vrot.slane %v423, 1
    %v425 = vadd.f32 %v423, %v424
    %v426 = vrot.slane %v395, 4
    %v427 = vadd.f32 %v395, %v426
    %v428 = vrot.slane %v427, 2
    %v429 = vadd.f32 %v427, %v428
    %v430 = vrot.slane %v429, 1
    %v431 = vadd.f32 %v429, %v430
    %v432 = vrot.slane %v396, 4
    %v433 = vadd.f32 %v396, %v432
    %v434 = vrot.slane %v433, 2
    %v435 = vadd.f32 %v433, %v434
    %v436 = vrot.slane %v435, 1
    %v437 = vadd.f32 %v435, %v436
    %v438 = vrot.slane %v397, 4
    %v439 = vadd.f32 %v397, %v438
    %v440 = vrot.slane %v439, 2
    %v441 = vadd.f32 %v439, %v440
    %v442 = vrot.slane %v441, 1
    %v443 = vadd.f32 %v441, %v442
    %v444 = vrot.slane %v398, 4
    %v445 = vadd.f32 %v398, %v444
    %v446 = vrot.slane %v445, 2
    %v447 = vadd.f32 %v445, %v446
    %v448 = vrot.slane %v447, 1
    %v449 = vadd.f32 %v447, %v448
    %v450 = vrot.slane %v399, 4
    %v451 = vadd.f32 %v399, %v450
    %v452 = vrot.slane %v451, 2
    %v453 = vadd.f32 %v451, %v452
    %v454 = vrot.slane %v453, 1
    %v455 = vadd.f32 %v453, %v454
    %v456 = vrot.slane %v400, 4
    %v457 = vadd.f32 %v400, %v456
    %v458 = vrot.slane %v457, 2
    %v459 = vadd.f32 %v457, %v458
    %v460 = vrot.slane %v459, 1
    %v461 = vadd.f32 %v459, %v460
    %v462 = vrot.slane %v401, 4
    %v463 = vadd.f32 %v401, %v462
    %v464 = vrot.slane %v463, 2
    %v465 = vadd.f32 %v463, %v464
    %v466 = vrot.slane %v465, 1
    %v467 = vadd.f32 %v465, %v466
    %v468 = vrot.slane %v402, 4
    %v469 = vadd.f32 %v402, %v468
    %v470 = vrot.slane %v469, 2
    %v471 = vadd.f32 %v469, %v470
    %v472 = vrot.slane %v471, 1
    %v473 = vadd.f32 %v471, %v472
    %v474 = vrot.slane %v403, 4
    %v475 = vadd.f32 %v403, %v474
    %v476 = vrot.slane %v475, 2
    %v477 = vadd.f32 %v475, %v476
    %v478 = vrot.slane %v477, 1
    %v479 = vadd.f32 %v477, %v478
    %v480 = vrot.slane %v404, 4
    %v481 = vadd.f32 %v404, %v480
    %v482 = vrot.slane %v481, 2
    %v483 = vadd.f32 %v481, %v482
    %v484 = vrot.slane %v483, 1
    %v485 = vadd.f32 %v483, %v484
    %v486 = vrot.slane %v405, 4
    %v487 = vadd.f32 %v405, %v486
    %v488 = vrot.slane %v487, 2
    %v489 = vadd.f32 %v487, %v488
    %v490 = vrot.slane %v489, 1
    %v491 = vadd.f32 %v489, %v490
    %v492 = vrot.slane %v406, 4
    %v493 = vadd.f32 %v406, %v492
    %v494 = vrot.slane %v493, 2
    %v495 = vadd.f32 %v493, %v494
    %v496 = vrot.slane %v495, 1
    %v497 = vadd.f32 %v495, %v496
    %v498 = vrot.slane %v407, 4
    %v499 = vadd.f32 %v407, %v498
    %v500 = vrot.slane %v499, 2
    %v501 = vadd.f32 %v499, %v500
    %v502 = vrot.slane %v501, 1
    %v503 = vadd.f32 %v501, %v502
    %vm520 = vcmask 1041409
    %v521 = vsel %vm520, %v419, %v413
    %v522 = vsel %vm520, %v431, %v425
    %v523 = vsel %vm520, %v443, %v437
    %v524 = vsel %vm520, %v455, %v449
    %v525 = vsel %vm520, %v467, %v461
    %v526 = vsel %vm520, %v479, %v473
    %v527 = vsel %vm520, %v491, %v485
    %v528 = vsel %vm520, %v503, %v497
    %v537 = vadd.f32 %v304, %v521
    %v538 = vadd.f32 %v305, %v522
    %v539 = vadd.f32 %v306, %v523
    %v540 = vadd.f32 %v307, %v524
    %v541 = vadd.f32 %v308, %v525
    %v542 = vadd.f32 %v309, %v526
    %v543 = vadd.f32 %v310, %v527
    %v544 = vadd.f32 %v311, %v528
    %545 = vst [vmem:[#allocation2] sm:$0x3] %v537
    %546 = vst [vmem:[#allocation2 + $0x2] sm:$0x3] %v538
    %547 = vst [vmem:[#allocation2 + $0x4] sm:$0x3] %v539
    %548 = vst [vmem:[#allocation2 + $0x6] sm:$0x3] %v540
    %549 = vst [vmem:[#allocation2 + $0x8] sm:$0x3] %v541
    %550 = vst [vmem:[#allocation2 + $0xa] sm:$0x3] %v542
    %551 = vst [vmem:[#allocation2 + $0xc] sm:$0x3] %v543
    %552 = vst [vmem:[#allocation2 + $0xe] sm:$0x3] %v544
    %v553 = vld [vmem:[#allocation3] sm:$0x3]
    %v554 = vld [vmem:[#allocation3 + $0x2] sm:$0x3]
    %v555 = vld [vmem:[#allocation3 + $0x4] sm:$0x3]
    %v556 = vld [vmem:[#allocation3 + $0x6] sm:$0x3]
    %v557 = vld [vmem:[#allocation3 + $0x8] sm:$0x3]
    %v558 = vld [vmem:[#allocation3 + $0xa] sm:$0x3]
    %v559 = vld [vmem:[#allocation3 + $0xc] sm:$0x3]
    %v560 = vld [vmem:[#allocation3 + $0xe] sm:$0x3]
    %vm561 = vcmask 7168
    %v562 = vsel %vm561, %v288, 0.0
    %v563 = vrot.slane %v562, 4
    %v564 = vadd.f32 %v562, %v563
    %v565 = vrot.slane %v564, 2
    %v566 = vadd.f32 %v564, %v565
    %v567 = vrot.slane %v566, 1
    %v568 = vadd.f32 %v566, %v567
    %v569 = vsel %vm561, %v289, 0.0
    %v570 = vrot.slane %v569, 4
    %v571 = vadd.f32 %v569, %v570
    %v572 = vrot.slane %v571, 2
    %v573 = vadd.f32 %v571, %v572
    %v574 = vrot.slane %v573, 1
    %v575 = vadd.f32 %v573, %v574
    %v576 = vsel %vm561, %v290, 0.0
    %v577 = vrot.slane %v576, 4
    %v578 = vadd.f32 %v576, %v577
    %v579 = vrot.slane %v578, 2
    %v580 = vadd.f32 %v578, %v579
    %v581 = vrot.slane %v580, 1
    %v582 = vadd.f32 %v580, %v581
    %v583 = vsel %vm561, %v291, 0.0
    %v584 = vrot.slane %v583, 4
    %v585 = vadd.f32 %v583, %v584
    %v586 = vrot.slane %v585, 2
    %v587 = vadd.f32 %v585, %v586
    %v588 = vrot.slane %v587, 1
    %v589 = vadd.f32 %v587, %v588
    %v590 = vsel %vm561, %v292, 0.0
    %v591 = vrot.slane %v590, 4
    %v592 = vadd.f32 %v590, %v591
    %v593 = vrot.slane %v592, 2
    %v594 = vadd.f32 %v592, %v593
    %v595 = vrot.slane %v594, 1
    %v596 = vadd.f32 %v594, %v595
    %v597 = vsel %vm561, %v293, 0.0
    %v598 = vrot.slane %v597, 4
    %v599 = vadd.f32 %v597, %v598
    %v600 = vrot.slane %v599, 2
    %v601 = vadd.f32 %v599, %v600
    %v602 = vrot.slane %v601, 1
    %v603 = vadd.f32 %v601, %v602
    %v604 = vsel %vm561, %v294, 0.0
    %v605 = vrot.slane %v604, 4
    %v606 = vadd.f32 %v604, %v605
    %v607 = vrot.slane %v606, 2
    %v608 = vadd.f32 %v606, %v607
    %v609 = vrot.slane %v608, 1
    %v610 = vadd.f32 %v608, %v609
    %v611 = vsel %vm561, %v295, 0.0
    %v612 = vrot.slane %v611, 4
    %v613 = vadd.f32 %v611, %v612
    %v614 = vrot.slane %v613, 2
    %v615 = vadd.f32 %v613, %v614
    %v616 = vrot.slane %v615, 1
    %v617 = vadd.f32 %v615, %v616
    %v618 = vsel %vm561, %v296, 0.0
    %v619 = vrot.slane %v618, 4
    %v620 = vadd.f32 %v618, %v619
    %v621 = vrot.slane %v620, 2
    %v622 = vadd.f32 %v620, %v621
    %v623 = vrot.slane %v622, 1
    %v624 = vadd.f32 %v622, %v623
    %v625 = vsel %vm561, %v297, 0.0
    %v626 = vrot.slane %v625, 4
    %v627 = vadd.f32 %v625, %v626
    %v628 = vrot.slane %v627, 2
    %v629 = vadd.f32 %v627, %v628
    %v630 = vrot.slane %v629, 1
    %v631 = vadd.f32 %v629, %v630
    %v632 = vsel %vm561, %v298, 0.0
    %v633 = vrot.slane %v632, 4
    %v634 = vadd.f32 %v632, %v633
    %v635 = vrot.slane %v634, 2
    %v636 = vadd.f32 %v634, %v635
    %v637 = vrot.slane %v636, 1
    %v638 = vadd.f32 %v636, %v637
    %v639 = vsel %vm561, %v299, 0.0
    %v640 = vrot.slane %v639, 4
    %v641 = vadd.f32 %v639, %v640
    %v642 = vrot.slane %v641, 2
    %v643 = vadd.f32 %v641, %v642
    %v644 = vrot.slane %v643, 1
    %v645 = vadd.f32 %v643, %v644
    %v646 = vsel %vm561, %v300, 0.0
    %v647 = vrot.slane %v646, 4
    %v648 = vadd.f32 %v646, %v647
    %v649 = vrot.slane %v648, 2
    %v650 = vadd.f32 %v648, %v649
    %v651 = vrot.slane %v650, 1
    %v652 = vadd.f32 %v650, %v651
    %v653 = vsel %vm561, %v301, 0.0
    %v654 = vrot.slane %v653, 4
    %v655 = vadd.f32 %v653, %v654
    %v656 = vrot.slane %v655, 2
    %v657 = vadd.f32 %v655, %v656
    %v658 = vrot.slane %v657, 1
    %v659 = vadd.f32 %v657, %v658
    %v660 = vsel %vm561, %v302, 0.0
    %v661 = vrot.slane %v660, 4
    %v662 = vadd.f32 %v660, %v661
    %v663 = vrot.slane %v662, 2
    %v664 = vadd.f32 %v662, %v663
    %v665 = vrot.slane %v664, 1
    %v666 = vadd.f32 %v664, %v665
    %v667 = vsel %vm561, %v303, 0.0
    %v668 = vrot.slane %v667, 4
    %v669 = vadd.f32 %v667, %v668
    %v670 = vrot.slane %v669, 2
    %v671 = vadd.f32 %v669, %v670
    %v672 = vrot.slane %v671, 1
    %v673 = vadd.f32 %v671, %v672
    %v690 = vsel %vm520, %v575, %v568
    %v691 = vsel %vm520, %v589, %v582
    %v692 = vsel %vm520, %v603, %v596
    %v693 = vsel %vm520, %v617, %v610
    %v694 = vsel %vm520, %v631, %v624
    %v695 = vsel %vm520, %v645, %v638
    %v696 = vsel %vm520, %v659, %v652
    %v697 = vsel %vm520, %v673, %v666
    %v706 = vadd.f32 %v553, %v690
    %v707 = vadd.f32 %v554, %v691
    %v708 = vadd.f32 %v555, %v692
    %v709 = vadd.f32 %v556, %v693
    %v710 = vadd.f32 %v557, %v694
    %v711 = vadd.f32 %v558, %v695
    %v712 = vadd.f32 %v559, %v696
    %v713 = vadd.f32 %v560, %v697
    %vm714 = vcmask 1024
    %715 = vst.msk [vmem:[#allocation3] sm:$0x3] %vm714, %v706
    %716 = vst.msk [vmem:[#allocation3 + $0x2] sm:$0x3] %vm714, %v707
    %717 = vst.msk [vmem:[#allocation3 + $0x4] sm:$0x3] %vm714, %v708
    %718 = vst.msk [vmem:[#allocation3 + $0x6] sm:$0x3] %vm714, %v709
    %719 = vst.msk [vmem:[#allocation3 + $0x8] sm:$0x3] %vm714, %v710
    %720 = vst.msk [vmem:[#allocation3 + $0xa] sm:$0x3] %vm714, %v711
    %721 = vst.msk [vmem:[#allocation3 + $0xc] sm:$0x3] %vm714, %v712
    %722 = vst.msk [vmem:[#allocation3 + $0xe] sm:$0x3] %vm714, %v713
    // Predicated region
    $region22: #{tpu_custom_call.1} parent=1 // pred_check
      %p723 = pneg %p19
    $region23: #{tpu_custom_call.1} parent=1 // pred_check_branch
      %725 = sbr.rel (%p723) target = $region25
    $region24: #{tpu_custom_call.1} parent=1 // pred_region
      %v726 = vld [vmem:[#allocation3] sm:$0x3]
      %v727 = vld [vmem:[#allocation3 + $0x2] sm:$0x3]
      %v728 = vld [vmem:[#allocation3 + $0x4] sm:$0x3]
      %v729 = vld [vmem:[#allocation3 + $0x6] sm:$0x3]
      %v730 = vld [vmem:[#allocation3 + $0x8] sm:$0x3]
      %v731 = vld [vmem:[#allocation3 + $0xa] sm:$0x3]
      %v732 = vld [vmem:[#allocation3 + $0xc] sm:$0x3]
      %v733 = vld [vmem:[#allocation3 + $0xe] sm:$0x3]
      %v734 = vmax.f32 %v726, 1e-09
      %v735 = vmax.f32 %v727, 1e-09
      %v736 = vmax.f32 %v728, 1e-09
      %v737 = vmax.f32 %v729, 1e-09
      %v738 = vmax.f32 %v730, 1e-09
      %v739 = vmax.f32 %v731, 1e-09
      %v740 = vmax.f32 %v732, 1e-09
      %v741 = vmax.f32 %v733, 1e-09
      %v742 = vrcp.pop %v734
      %v743 = vrcp.pop %v735
      %v744 = vrcp.pop %v736
      %v745 = vrcp.pop %v737
      %v746 = vrcp.pop %v738
      %v747 = vrcp.pop %v739
      %v748 = vrcp.pop %v740
      %v749 = vrcp.pop %v741
      %v750 = vld [vmem:[#allocation2] sm:$0x3]
      %v751 = vld [vmem:[#allocation2 + $0x2] sm:$0x3]
      %v752 = vld [vmem:[#allocation2 + $0x4] sm:$0x3]
      %v753 = vld [vmem:[#allocation2 + $0x6] sm:$0x3]
      %v754 = vld [vmem:[#allocation2 + $0x8] sm:$0x3]
      %v755 = vld [vmem:[#allocation2 + $0xa] sm:$0x3]
      %v756 = vld [vmem:[#allocation2 + $0xc] sm:$0x3]
      %v757 = vld [vmem:[#allocation2 + $0xe] sm:$0x3]
      %759 = vset.pattern.permute.xlu0 0
      %760 = vperm.xlu0 %759, %v742
      %v761 = vpop.permute.xlu0 %760
      %764 = vset.pattern.permute.xlu0 0
      %765 = vperm.xlu0 %764, %v743
      %v766 = vpop.permute.xlu0 %765
      %769 = vset.pattern.permute.xlu0 0
      %770 = vperm.xlu0 %769, %v744
      %v771 = vpop.permute.xlu0 %770
      %774 = vset.pattern.permute.xlu0 0
      %775 = vperm.xlu0 %774, %v745
      %v776 = vpop.permute.xlu0 %775
      %779 = vset.pattern.permute.xlu0 0
      %780 = vperm.xlu0 %779, %v746
      %v781 = vpop.permute.xlu0 %780
      %784 = vset.pattern.permute.xlu0 0
      %785 = vperm.xlu0 %784, %v747
      %v786 = vpop.permute.xlu0 %785
      %789 = vset.pattern.permute.xlu0 0
      %790 = vperm.xlu0 %789, %v748
      %v791 = vpop.permute.xlu0 %790
      %794 = vset.pattern.permute.xlu0 0
      %795 = vperm.xlu0 %794, %v749
      %v796 = vpop.permute.xlu0 %795
      %v798 = vmul.f32 %v750, %v761
      %v799 = vmul.f32 %v751, %v766
      %v800 = vmul.f32 %v752, %v771
      %v801 = vmul.f32 %v753, %v776
      %v802 = vmul.f32 %v754, %v781
      %v803 = vmul.f32 %v755, %v786
      %v804 = vmul.f32 %v756, %v791
      %v805 = vmul.f32 %v757, %v796
      %v814 = vrot.slane %v798, 1
      %v815 = vrot.slane %v799, 1
      %v816 = vrot.slane %v800, 1
      %v817 = vrot.slane %v801, 1
      %v818 = vrot.slane %v802, 1
      %v819 = vrot.slane %v803, 1
      %v820 = vrot.slane %v804, 1
      %v821 = vrot.slane %v805, 1
      %v830 = vmul.f32 %v798, %v814
      %v831 = vmul.f32 %v799, %v815
      %v832 = vmul.f32 %v800, %v816
      %v833 = vmul.f32 %v801, %v817
      %v834 = vmul.f32 %v802, %v818
      %v835 = vmul.f32 %v803, %v819
      %v836 = vmul.f32 %v804, %v820
      %v837 = vmul.f32 %v805, %v821
      %v846 = vrot.slane %v831, 7
      %v847 = vsel %vm520, %v846, %v830
      %v848 = vrot.slane %v832, 6
      %vm849 = vcmask 1042434
      %v850 = vsel %vm849, %v848, %v847
      %v851 = vrot.slane %v833, 5
      %vm852 = vcmask 1043459
      %v853 = vsel %vm852, %v851, %v850
      %v854 = vrot.slane %v834, 4
      %vm855 = vcmask 1044484
      %v856 = vsel %vm855, %v854, %v853
      %v857 = vrot.slane %v835, 3
      %vm858 = vcmask 1045509
      %v859 = vsel %vm858, %v857, %v856
      %v860 = vrot.slane %v836, 2
      %vm861 = vcmask 1046534
      %v862 = vsel %vm861, %v860, %v859
      %v863 = vrot.slane %v837, 1
      %vm864 = vcmask 1047559
      %v865 = vsel %vm864, %v863, %v862
      %867 = vadd.xlane.f32.xlu0 %v865
      %v868 = vpop.xlane.xlu0 %867
      %v869 = vmul.f32 %v798, %v798
      %v870 = vmul.f32 %v799, %v799
      %v871 = vmul.f32 %v800, %v800
      %v872 = vmul.f32 %v801, %v801
      %v873 = vmul.f32 %v802, %v802
      %v874 = vmul.f32 %v803, %v803
      %v875 = vmul.f32 %v804, %v804
      %v876 = vmul.f32 %v805, %v805
      %v885 = vrot.slane %v870, 7
      %v886 = vsel %vm520, %v885, %v869
      %v887 = vrot.slane %v871, 6
      %v888 = vsel %vm849, %v887, %v886
      %v889 = vrot.slane %v872, 5
      %v890 = vsel %vm852, %v889, %v888
      %v891 = vrot.slane %v873, 4
      %v892 = vsel %vm855, %v891, %v890
      %v893 = vrot.slane %v874, 3
      %v894 = vsel %vm858, %v893, %v892
      %v895 = vrot.slane %v875, 2
      %v896 = vsel %vm861, %v895, %v894
      %v897 = vrot.slane %v876, 1
      %v898 = vsel %vm864, %v897, %v896
      %900 = vadd.xlane.f32.xlu0 %v898
      %v901 = vpop.xlane.xlu0 %900
      %v902 = vsel %vm849, %v885, %v869
      %v903 = vsel %vm852, %v887, %v902
      %v904 = vsel %vm855, %v889, %v903
      %v905 = vsel %vm858, %v891, %v904
      %v906 = vsel %vm861, %v893, %v905
      %v907 = vsel %vm864, %v895, %v906
      %vm910 = vcmask 1047553
      %v911 = vsel %vm910, %v907, 0.0
      %912 = vadd.xlane.f32.xlu0 %v911
      %v913 = vpop.xlane.xlu0 %912
      %vm914 = vcmask 1040384
      %v915 = vsel %vm914, %v897, 0.0
      %916 = vadd.xlane.f32.xlu0 %v915
      %v917 = vpop.xlane.xlu0 %916
      %vm920 = vcmask 1046528
      %v921 = vrot.slane %v913, 1
      %v922 = vrot.slane %v917, 1
      %v923 = vsel %vm920, %v921, %v922
      %v925 = vmul.f32 %v901, %v923
      %v926 = vmax.f32 %v925, 1e-08
      %v927 = vrsqrt.pop %v926
      %v928 = vmul.f32 %v868, %v927
      %930 = vset.pattern.permute.xlu0 0
      %931 = vperm.xlu0 %930, %v928
      %v932 = vpop.permute.xlu0 %931
      %934 = vst [vmem:[#allocation4] sm:$0xff] %v932
    $region25: #{tpu_custom_call.1} parent=1 // pred_fallthru
      _
    // Predicated region
    $region26: #{tpu_custom_call.1} parent=1 // pred_check
      _
    $region27: #{tpu_custom_call.1} parent=1 // pred_check_branch
      %936 = sbr.rel (0) target = $region29
    $region28: #{tpu_custom_call.1} parent=1 // pred_region
      %s938 = ssub.s32 128, 128
      %939 = vsyncadd [#allocation5], %s938
      %s941 = sshll.u32 [#allocation4], 4
      %s942 = int_to_ptr.vmem [resolvable:$true] %s941
      %944 = dma.vmem_to_hbm [thread:$0]  %s942, 128, %s4, [#allocation5]
    $region29: #{tpu_custom_call.1} parent=1 // pred_fallthru
      _
    // Predicated region
    $region30: #{tpu_custom_call.1} parent=1 // pred_check
      _
    $region31: #{tpu_custom_call.1} parent=1 // pred_check_branch
      %946 = sbr.rel (0) target = $region33
    $region32: #{tpu_custom_call.1} parent=1 // pred_region
      %947 = dma.done [#allocation5], 128
    $region33: #{tpu_custom_call.1} parent=1 // pred_fallthru
      _
    %948 = vsyncpa [#allocation5], 1

</llo_original>
